<compile_context>
chip_gen: v7x
topology: tpu7x:2x2x1
jax: 0.10.0
libtpu: 0.0.40
codegen_flags: <defaults>
</compile_context>

<pallas_src>
import functools

import jax
import jax.numpy as jnp
from jax import lax
from jax.experimental import pallas as pl
from jax.experimental.pallas import tpu as pltpu


def _wrapper_kernel(x_ref, w_ref, b_ref, o_ref, *, img_rows):
    """out = clip(conv3x3_same(2*x - 1) + bias, -1, 1), all images in one shot.

    x_ref: (N*H, W*Cin)        f32   raw [0,1] activations, lane-dense rows
    w_ref: (3, W*Cin, W*Cout)  bf16  banded Toeplitz weights, one per ky tap
    b_ref: (1, W*Cout)         f32   bias tiled along W
    o_ref: (N*H, W*Cout)       f32   lane-dense output (W*Cout == 128 here)
    """
    h = img_rows
    rows = x_ref.shape[0]

    # pre_transform hoisted: one VPU pass over the whole block, exact in f32,
    # then cast to bf16 for the MXU (f32 accumulation below).
    xm = (2.0 * x_ref[...] - 1.0).astype(jnp.bfloat16)              # (N*H, W*Cin)

    # One MXU push per ky tap.  kx taps + horizontal zero padding live in the
    # banded RHS, so each dot natively produces the (N*H, W*Cout) layout.
    t0 = jnp.dot(xm, w_ref[0], preferred_element_type=jnp.float32)  # (N*H, W*Cout)
    t1 = jnp.dot(xm, w_ref[1], preferred_element_type=jnp.float32)
    t2 = jnp.dot(xm, w_ref[2], preferred_element_type=jnp.float32)

    # Vertical halo: ky=0 contributes to the row below, ky=2 to the row above.
    # Sublane rolls go to the XLU (separate issue slot); the wrapped rows
    # (h==0 / h==H-1 inside each image — exactly the rows that would otherwise
    # leak across image boundaries) are zeroed, reproducing the conv's
    # top/bottom zero padding.
    r = lax.broadcasted_iota(jnp.int32, t1.shape, 0) % h
    t0s = jnp.where(r == 0, 0.0, pltpu.roll(t0, shift=1, axis=0))
    t2s = jnp.where(r == h - 1, 0.0, pltpu.roll(t2, shift=rows - 1, axis=0))

    out = t0s + t1 + t2s + b_ref[...]                               # f32 bias add
    o_ref[...] = jnp.clip(out, -1.0, 1.0).astype(o_ref.dtype)       # post_transform


def _build_banded_weights(w_hwio, width):
    """Fold kx taps + horizontal 'SAME' zero padding of a 3x3 conv into three
    Toeplitz-banded RHS matrices of shape (W*Cin, W*Cout), one per ky tap:

        B_ky[w_in*Cin + ci, w*Cout + co] = w_hwio[ky, w_in - w + 1, ci, co]
        when 0 <= w_in - w + 1 <= 2, else 0.

    The zero entries cost a few free MXU FLOPs but buy a natively lane-dense
    matmul output and eliminate the im2col relayouts.
    """
    kh, kw, cin, cout = w_hwio.shape
    assert (kh, kw) == (3, 3), "banded construction assumes a 3x3 kernel"
    mats = []
    for ky in range(kh):
        band = jnp.zeros((width, cin, width, cout), jnp.float32)
        for kx in range(kw):
            # shift[w_in, w] = 1  iff  w_in == w + kx - 1  (edges truncate -> SAME pad)
            shift = jnp.eye(width, width, k=1 - kx, dtype=jnp.float32)
            band = band + jnp.einsum("pw,ic->piwc", shift,
                                     w_hwio[ky, kx].astype(jnp.float32))
        mats.append(band.reshape(width * cin, width * cout))
    return jnp.stack(mats).astype(jnp.bfloat16)        # (3, W*Cin, W*Cout) bf16


def model_wrapper_forward(x_nhwc, w_hwio, bias):
    """Forward of ModelWrapper(pre=2x-1, model=conv3x3 'SAME' + bias, post=clip).

    x_nhwc: (N, H, W, Cin) float32 in [0, 1]   (NHWC end-to-end, no transposes)
    w_hwio: (3, 3, Cin, Cout) float32
    bias:   (Cout,) float32
    returns (N, H, W, Cout) float32
    """
    n, h, w, cin = x_nhwc.shape
    cout = w_hwio.shape[-1]

    # Static guards for the layout this kernel is tuned for (alignment only;
    # the banded-weight math itself is shape-generic).
    assert (n * h) % 8 == 0, "N*H must be a multiple of 8 (sublane tiling)"
    assert (w * cout) % 128 == 0, "W*Cout must be a multiple of 128 (lane-dense output)"

    x2 = x_nhwc.reshape(n * h, w * cin).astype(jnp.float32)   # free row-major reshape
    wb = _build_banded_weights(w_hwio, w)                     # (3, W*Cin, W*Cout) bf16
    b_row = jnp.tile(bias.astype(jnp.float32), (w,)).reshape(1, w * cout)

    vmem = pltpu.MemorySpace.VMEM
    out2 = pl.pallas_call(
        functools.partial(_wrapper_kernel, img_rows=h),
        out_shape=jax.ShapeDtypeStruct((n * h, w * cout), jnp.float32),
        in_specs=[
            pl.BlockSpec(memory_space=vmem),   # x2      (N*H, W*Cin)
            pl.BlockSpec(memory_space=vmem),   # weights (3, W*Cin, W*Cout)
            pl.BlockSpec(memory_space=vmem),   # bias    (1, W*Cout)
        ],
        out_specs=pl.BlockSpec(memory_space=vmem),
    )(x2, wb, b_row)

    # Free reshape back to NHWC: row r = n*H + h, lane = w*Cout + c.
    return out2.reshape(n, h, w, cout)


# ----------------------------- references ---------------------------------

def _reference_f32(x_nhwc, w_hwio, bias):
    pre = 2.0 * x_nhwc - 1.0
    conv = lax.conv_general_dilated(
        pre, w_hwio, window_strides=(1, 1), padding="SAME",
        dimension_numbers=("NHWC", "HWIO", "NHWC"))
    return jnp.clip(conv + bias.reshape(1, 1, 1, -1), -1.0, 1.0)


def _reference_bf16(x_nhwc, w_hwio, bias):
    # Matches the kernel's numerics path: exact f32 pre-transform, bf16 MXU
    # inputs, f32 accumulation, f32 bias add + clip.
    pre = (2.0 * x_nhwc - 1.0).astype(jnp.bfloat16)
    conv = lax.conv_general_dilated(
        pre, w_hwio.astype(jnp.bfloat16), window_strides=(1, 1), padding="SAME",
        dimension_numbers=("NHWC", "HWIO", "NHWC"),
        preferred_element_type=jnp.float32)
    return jnp.clip(conv + bias.reshape(1, 1, 1, -1), -1.0, 1.0)


if __name__ == "__main__":
    key = jax.random.PRNGKey(0)
    kx, kw, kb = jax.random.split(key, 3)

    N, H, W, Cin, Cout = 2, 16, 16, 4, 8
    x = jax.random.uniform(kx, (N, H, W, Cin), jnp.float32)            # in [0,1], NHWC
    w = jax.random.normal(kw, (3, 3, Cin, Cout), jnp.float32) * 0.1    # HWIO
    b = jax.random.normal(kb, (Cout,), jnp.float32) * 0.1

    out = jax.block_until_ready(model_wrapper_forward(x, w, b))
    ref16 = jax.block_until_ready(_reference_bf16(x, w, b))
    ref32 = jax.block_until_ready(_reference_f32(x, w, b))

    assert out.shape == (N, H, W, Cout)
    assert jnp.allclose(out, ref16, atol=1e-4, rtol=1e-4), "mismatch vs bf16-matched reference"
    assert jnp.allclose(out, ref32, atol=5e-2, rtol=0.0), "mismatch vs f32 reference"
    print("KERNEL_OK")
</pallas_src>

<mosaic_0001>
module attributes {stable_mosaic.version = 11 : i64} {
  func.func @_wrapper_kernel(%arg0: memref<32x64xf32, #tpu.memory_space<vmem>>, %arg1: memref<3x64x128xbf16, #tpu.memory_space<vmem>>, %arg2: memref<1x128xf32, #tpu.memory_space<vmem>>, %arg3: memref<32x128xf32, #tpu.memory_space<vmem>>) attributes {dimension_semantics = [], scalar_prefetch = 0 : i64, scratch_operands = 0 : i64, tpu.core_type = #tpu.core_type<tc>} {
    %c0 = arith.constant 0 : index
    %c0_0 = arith.constant 0 : index
    %0 = vector.load %arg0[%c0, %c0_0] : memref<32x64xf32, #tpu.memory_space<vmem>>, vector<32x64xf32>
    %cst = arith.constant 2.000000e+00 : f32
    %1 = vector.broadcast %cst : f32 to vector<32x64xf32>
    %2 = arith.mulf %1, %0 : vector<32x64xf32>
    %cst_1 = arith.constant 1.000000e+00 : f32
    %3 = vector.broadcast %cst_1 : f32 to vector<32x64xf32>
    %4 = arith.subf %2, %3 : vector<32x64xf32>
    %5 = arith.truncf %4 : vector<32x64xf32> to vector<32x64xbf16>
    %c0_2 = arith.constant 0 : index
    %c0_3 = arith.constant 0 : index
    %c0_4 = arith.constant 0 : index
    %6 = vector.load %arg1[%c0_2, %c0_3, %c0_4] : memref<3x64x128xbf16, #tpu.memory_space<vmem>>, vector<1x64x128xbf16>
    %7 = vector.shape_cast %6 : vector<1x64x128xbf16> to vector<64x128xbf16>
    %cst_5 = arith.constant dense<0.000000e+00> : vector<32x128xf32>
    %8 = tpu.matmul %5, %7, %cst_5 {dimension_numbers = #tpu.dot_dimension_numbers<[1], [0], [0], [1], [0, 0, 1, 1], [], []>} : vector<32x64xbf16>, vector<64x128xbf16>, vector<32x128xf32> -> vector<32x128xf32>
    %c1 = arith.constant 1 : index
    %c0_6 = arith.constant 0 : index
    %c0_7 = arith.constant 0 : index
    %9 = vector.load %arg1[%c1, %c0_6, %c0_7] : memref<3x64x128xbf16, #tpu.memory_space<vmem>>, vector<1x64x128xbf16>
    %10 = vector.shape_cast %9 : vector<1x64x128xbf16> to vector<64x128xbf16>
    %cst_8 = arith.constant dense<0.000000e+00> : vector<32x128xf32>
    %11 = tpu.matmul %5, %10, %cst_8 {dimension_numbers = #tpu.dot_dimension_numbers<[1], [0], [0], [1], [0, 0, 1, 1], [], []>} : vector<32x64xbf16>, vector<64x128xbf16>, vector<32x128xf32> -> vector<32x128xf32>
    %c2 = arith.constant 2 : index
    %c0_9 = arith.constant 0 : index
    %c0_10 = arith.constant 0 : index
    %12 = vector.load %arg1[%c2, %c0_9, %c0_10] : memref<3x64x128xbf16, #tpu.memory_space<vmem>>, vector<1x64x128xbf16>
    %13 = vector.shape_cast %12 : vector<1x64x128xbf16> to vector<64x128xbf16>
    %cst_11 = arith.constant dense<0.000000e+00> : vector<32x128xf32>
    %14 = tpu.matmul %5, %13, %cst_11 {dimension_numbers = #tpu.dot_dimension_numbers<[1], [0], [0], [1], [0, 0, 1, 1], [], []>} : vector<32x64xbf16>, vector<64x128xbf16>, vector<32x128xf32> -> vector<32x128xf32>
    %15 = tpu.iota {dimensions = array<i32: 0>} : vector<32x128xi32>
    %c16_i32 = arith.constant 16 : i32
    %c0_i32 = arith.constant 0 : i32
    %16 = arith.cmpi eq, %c16_i32, %c0_i32 : i32
    %c1_i32 = arith.constant 1 : i32
    %17 = arith.select %16, %c1_i32, %c16_i32 : i32
    %18 = vector.broadcast %17 : i32 to vector<32x128xi32>
    %19 = arith.remsi %15, %18 : vector<32x128xi32>
    %c0_i32_12 = arith.constant 0 : i32
    %20 = vector.broadcast %c0_i32_12 : i32 to vector<32x128xi32>
    %21 = arith.cmpi ne, %19, %20 : vector<32x128xi32>
    %c0_i32_13 = arith.constant 0 : i32
    %22 = vector.broadcast %c0_i32_13 : i32 to vector<32x128xi32>
    %23 = arith.cmpi slt, %19, %22 : vector<32x128xi32>
    %c0_i32_14 = arith.constant 0 : i32
    %24 = arith.cmpi slt, %17, %c0_i32_14 : i32
    %25 = vector.broadcast %24 : i1 to vector<32x128xi1>
    %26 = vector.broadcast %25 : vector<32x128xi1> to vector<32x128xi1>
    %27 = arith.xori %23, %26 : vector<32x128xi1>
    %28 = arith.andi %27, %21 : vector<32x128xi1>
    %29 = vector.broadcast %17 : i32 to vector<32x128xi32>
    %30 = arith.addi %19, %29 : vector<32x128xi32>
    %31 = arith.select %28, %30, %19 : vector<32x128xi1>, vector<32x128xi32>
    %c0_i32_15 = arith.constant 0 : i32
    %32 = vector.broadcast %c0_i32_15 : i32 to vector<32x128xi32>
    %33 = arith.cmpi eq, %31, %32 : vector<32x128xi32>
    %c1_i32_16 = arith.constant 1 : i32
    %34 = tpu.dynamic_rotate %8 by %c1_i32_16 dim 0 : vector<32x128xf32>, i32 -> vector<32x128xf32>
    %cst_17 = arith.constant 0.000000e+00 : f32
    %35 = vector.broadcast %cst_17 : f32 to vector<32x128xf32>
    %36 = arith.select %33, %35, %34 : vector<32x128xi1>, vector<32x128xf32>
    %c15_i32 = arith.constant 15 : i32
    %37 = vector.broadcast %c15_i32 : i32 to vector<32x128xi32>
    %38 = arith.cmpi eq, %31, %37 : vector<32x128xi32>
    %c31_i32 = arith.constant 31 : i32
    %39 = tpu.dynamic_rotate %14 by %c31_i32 dim 0 : vector<32x128xf32>, i32 -> vector<32x128xf32>
    %cst_18 = arith.constant 0.000000e+00 : f32
    %40 = vector.broadcast %cst_18 : f32 to vector<32x128xf32>
    %41 = arith.select %38, %40, %39 : vector<32x128xi1>, vector<32x128xf32>
    %42 = arith.addf %36, %11 : vector<32x128xf32>
    %43 = arith.addf %42, %41 : vector<32x128xf32>
    %c0_19 = arith.constant 0 : index
    %c0_20 = arith.constant 0 : index
    %44 = vector.load %arg2[%c0_19, %c0_20] : memref<1x128xf32, #tpu.memory_space<vmem>>, vector<1x128xf32>
    %45 = vector.broadcast %44 : vector<1x128xf32> to vector<32x128xf32>
    %46 = arith.addf %43, %45 : vector<32x128xf32>
    %cst_21 = arith.constant -1.000000e+00 : f32
    %cst_22 = arith.constant 1.000000e+00 : f32
    %47 = vector.broadcast %cst_21 : f32 to vector<32x128xf32>
    %48 = arith.maximumf %47, %46 : vector<32x128xf32>
    %49 = vector.broadcast %cst_22 : f32 to vector<32x128xf32>
    %50 = arith.minimumf %49, %48 : vector<32x128xf32>
    %c0_23 = arith.constant 0 : index
    %c0_24 = arith.constant 0 : index
    %51 = vector.load %arg3[%c0_23, %c0_24] : memref<32x128xf32, #tpu.memory_space<vmem>>, vector<32x128xf32>
    tpu.vector_store %arg3[%c0_23, %c0_24], %50 {strides = array<i32>} : memref<32x128xf32, #tpu.memory_space<vmem>>, vector<32x128xf32>,
    return
  }
}

</mosaic_0001>

<llo_original>
// kernel: tpu_custom_call.1
$region0: #{tpu_custom_call.1}
  #allocation0 [shape = 'u32[]', space=smem, size = 0x4, offset = 0x4, fixed_abs, tag = 'smem constant byte address 0x4 - core index']
  #allocation1 [shape = 'u32[144,128]{1,0:T(1,128)}', space=vmem, size = 0x12000, scoped, tag = 'internal scratch']
  %s0 = inlined_call_operand.hbm [shape: f32[32,64], index: 0, kind: input, shape index: {}]
  %s1 = inlined_call_operand.hbm [shape: bf16[3,64,128], index: 1, kind: input, shape index: {}]
  %s2 = inlined_call_operand.vmem [shape: f32[1,128], index: 2, kind: input, shape index: {}]
  %s3 = inlined_call_operand.hbm [shape: f32[32,128], index: 3, kind: output, shape index: {}]
  %s4 = sld [smem:[#allocation0]]
  $region30: #{tpu_custom_call.1} parent=0
    _
  %s6 = ssub.s32 1, %s4
  %s7 = scalar_select 0, %s6, %s4
  $region1: #{tpu_custom_call.1} parent=0
    #allocation2 [shape = 'u8[16384]{0}', space=vmem, size = 0x4000, scoped, tag = 'input window, operand 0, single buffered']
    #allocation3 [shape = 's32[1]{0}', space=sflag, size = 0x4, scoped, tag = 'scoped memory for tpu_custom_call.1']
    #allocation4 [shape = 's32[1]{0}', space=sflag, size = 0x4, scoped, tag = 'scoped memory for tpu_custom_call.1']
    #allocation5 [shape = 'u8[49152]{0}', space=vmem, size = 0xc000, scoped, tag = 'input window, operand 1, single buffered']
    #allocation6 [shape = 's32[1]{0}', space=sflag, size = 0x4, scoped, tag = 'scoped memory for tpu_custom_call.1']
    #allocation7 [shape = 'u8[16384]{0}', space=vmem, size = 0x4000, scoped, tag = 'output window, operand 0, single buffered']
    %8 = vsyncpa [#allocation3], 0
    %9 = vsyncpa [#allocation6], 0
    %10 = vsyncpa [#allocation4], 0
    // Predicated region
    $region2: #{tpu_custom_call.1} parent=1 // pred_check
      _
    $region3: #{tpu_custom_call.1} parent=1 // pred_check_branch
      %12 = sbr.rel (0) target = $region5
    $region4: #{tpu_custom_call.1} parent=1 // pred_region
      %s14 = ssub.s32 512, 512
      %15 = vsyncadd [#allocation3], %s14
      %s16 = sshll.u32 [#allocation2], 4
      %s17 = int_to_ptr.vmem [resolvable:$true] %s16
      %22 = dma.hbm_to_vmem [thread:$0]  %s0, 512, %s17, [#allocation3], 128, 128, 8
    $region5: #{tpu_custom_call.1} parent=1 // pred_fallthru
      _
    // Predicated region
    $region6: #{tpu_custom_call.1} parent=1 // pred_check
      _
    $region7: #{tpu_custom_call.1} parent=1 // pred_check_branch
      %24 = sbr.rel (0) target = $region9
    $region8: #{tpu_custom_call.1} parent=1 // pred_region
      %s26 = ssub.s32 1536, 1536
      %27 = vsyncadd [#allocation6], %s26
      %s28 = sshll.u32 [#allocation5], 4
      %s29 = int_to_ptr.vmem [resolvable:$true] %s28
      %34 = dma.hbm_to_vmem [thread:$0]  %s1, 1536, %s29, [#allocation6], 64, 64, 4
    $region9: #{tpu_custom_call.1} parent=1 // pred_fallthru
      _
    // Predicated region
    $region10: #{tpu_custom_call.1} parent=1 // pred_check
      _
    $region11: #{tpu_custom_call.1} parent=1 // pred_check_branch
      %36 = sbr.rel (0) target = $region13
    $region12: #{tpu_custom_call.1} parent=1 // pred_region
      _
    $region13: #{tpu_custom_call.1} parent=1 // pred_fallthru
      _
    // Predicated region
    $region14: #{tpu_custom_call.1} parent=1 // pred_check
      _
    $region15: #{tpu_custom_call.1} parent=1 // pred_check_branch
      %38 = sbr.rel (0) target = $region17
    $region16: #{tpu_custom_call.1} parent=1 // pred_region
      %39 = dma.done [#allocation3], 512
    $region17: #{tpu_custom_call.1} parent=1 // pred_fallthru
      _
    // Predicated region
    $region18: #{tpu_custom_call.1} parent=1 // pred_check
      _
    $region19: #{tpu_custom_call.1} parent=1 // pred_check_branch
      %41 = sbr.rel (0) target = $region21
    $region20: #{tpu_custom_call.1} parent=1 // pred_region
      %42 = dma.done [#allocation6], 1536
    $region21: #{tpu_custom_call.1} parent=1 // pred_fallthru
      _
    %v44 = vld [vmem:[#allocation2] sm:$0xff]
    %v45 = vld [vmem:[#allocation2 + $0x8] sm:$0xff]
    %v46 = vld [vmem:[#allocation2 + $0x10] sm:$0xff]
    %v47 = vld [vmem:[#allocation2 + $0x18] sm:$0xff]
    %v48 = vmul.f32 %v44, 2.0
    %v49 = vmul.f32 %v45, 2.0
    %v50 = vmul.f32 %v46, 2.0
    %v51 = vmul.f32 %v47, 2.0
    %v52 = vsub.f32 %v48, 1.0
    %v53 = vsub.f32 %v49, 1.0
    %v54 = vsub.f32 %v50, 1.0
    %v55 = vsub.f32 %v51, 1.0
    %v56 = vpack.c.bf16 %v53, %v52
    %v57 = vpack.c.bf16 %v55, %v54
    %v58 = vld [vmem:[#allocation5] sm:$0xf]
    %v59 = vld [vmem:[#allocation5 + $0x4] sm:$0xf]
    %v60 = vld [vmem:[#allocation5 + $0x8] sm:$0xf]
    %v61 = vld [vmem:[#allocation5 + $0xc] sm:$0xf]
    %v62 = vld [vmem:[#allocation5 + $0x10] sm:$0xf]
    %v63 = vld [vmem:[#allocation5 + $0x14] sm:$0xf]
    %v64 = vld [vmem:[#allocation5 + $0x18] sm:$0xf]
    %v65 = vld [vmem:[#allocation5 + $0x1c] sm:$0xf]
    %v74 = vunpack.c.l.b16 %v58
    %v75 = vunpack.c.l.b16 %v59
    %v76 = vunpack.c.l.b16 %v60
    %v77 = vunpack.c.l.b16 %v61
    %v78 = vunpack.c.l.b16 %v62
    %v79 = vunpack.c.l.b16 %v63
    %v80 = vunpack.c.l.b16 %v64
    %v81 = vunpack.c.l.b16 %v65
    %v82 = vpack.c.b16 %v75, %v74
    %v83 = vpack.c.b16 %v77, %v76
    %v84 = vpack.c.b16 %v79, %v78
    %v85 = vpack.c.b16 %v81, %v80
    %vm90 = vcmask 523264
    %v92 = vsel %vm90, %v56, 0
    %v95 = vsel %vm90, %v57, 0
    %97 = vmatprep.subr.bf16.mxu0 0
    %98 = vmatpush1.bf16.msra.mxu0 %v82
    %99 = vmatprep.subr.bf16.mxu0 0
    %100 = vmatpush1.bf16.msra.mxu0 %v83
    %101 = vmatprep.subr.bf16.mxu0 0
    %102 = vmatpush1.bf16.msra.mxu0 %v84
    %103 = vmatprep.subr.bf16.mxu0 0
    %104 = vmatpush1.bf16.msra.mxu0 %v85
    %105 = vmatprep.subr.bf16.mxu0 0
    %106 = vmatpush1.bf16.msra.mxu0 0
    %107 = vmatprep.subr.bf16.mxu0 0
    %108 = vmatpush1.bf16.msra.mxu0 0
    %109 = vmatprep.subr.bf16.mxu0 0
    %110 = vmatpush1.bf16.msra.mxu0 0
    %111 = vmatprep.subr.bf16.mxu0 0
    %112 = vmatpush1.bf16.msra.mxu0 0
    %113 = vmatprep.subr.bf16.mxu0 0
    %114 = vmatpush1.bf16.msra.mxu0 0
    %115 = vmatprep.subr.bf16.mxu0 0
    %116 = vmatpush1.bf16.msra.mxu0 0
    %117 = vmatprep.subr.bf16.mxu0 0
    %118 = vmatpush1.bf16.msra.mxu0 0
    %119 = vmatprep.subr.bf16.mxu0 0
    %120 = vmatpush1.bf16.msra.mxu0 0
    %121 = vmatprep.subr.bf16.mxu0 0
    %122 = vmatpush1.bf16.msra.mxu0 0
    %123 = vmatprep.subr.bf16.mxu0 0
    %124 = vmatpush1.bf16.msra.mxu0 0
    %125 = vmatprep.subr.bf16.mxu0 0
    %126 = vmatpush1.bf16.msra.mxu0 0
    %127 = vmatprep.subr.bf16.mxu0 0
    %128 = vmatpush1.bf16.msra.mxu0 0
    %129 = vmatprep.mubr.bf16.mxu0 0
    %130 = vmatmul.mubr.bf16.gmra.mrb[0].mxu0 %v92
    %v131 = vpop.f32.mrb[0].mxu0
    %v132 = vadd.f32 0.0, %v131
    %v133 = vpop.f32.mrb[0].mxu0
    %v134 = vpop.f32.mrb[0].mxu0
    %v135 = vadd.f32 0.0, %v134
    %v136 = vpop.f32.mrb[0].mxu0
    %137 = vmatprep.mubr.bf16.mxu0 0
    %138 = vmatmul.mubr.bf16.gmra.mrb[0].mxu0 %v95
    %v139 = vpop.f32.mrb[0].mxu0
    %v140 = vadd.f32 0.0, %v139
    %v141 = vpop.f32.mrb[0].mxu0
    %v142 = vpop.f32.mrb[0].mxu0
    %v143 = vadd.f32 0.0, %v142
    %v144 = vpop.f32.mrb[0].mxu0
    %145 = vdwg.mxu0
    %s146 = scalar_lea.vmem [#allocation5], 32
    %v147 = vld [vmem:[%s146] sm:$0xf]
    %v148 = vld [vmem:[%s146 + $0x4] sm:$0xf]
    %v149 = vld [vmem:[%s146 + $0x8] sm:$0xf]
    %v150 = vld [vmem:[%s146 + $0xc] sm:$0xf]
    %v151 = vld [vmem:[%s146 + $0x10] sm:$0xf]
    %v152 = vld [vmem:[%s146 + $0x14] sm:$0xf]
    %v153 = vld [vmem:[%s146 + $0x18] sm:$0xf]
    %v154 = vld [vmem:[%s146 + $0x1c] sm:$0xf]
    %v163 = vunpack.c.l.b16 %v147
    %v164 = vunpack.c.l.b16 %v148
    %v165 = vunpack.c.l.b16 %v149
    %v166 = vunpack.c.l.b16 %v150
    %v167 = vunpack.c.l.b16 %v151
    %v168 = vunpack.c.l.b16 %v152
    %v169 = vunpack.c.l.b16 %v153
    %v170 = vunpack.c.l.b16 %v154
    %v171 = vpack.c.b16 %v164, %v163
    %v172 = vpack.c.b16 %v166, %v165
    %v173 = vpack.c.b16 %v168, %v167
    %v174 = vpack.c.b16 %v170, %v169
    %179 = vmatprep.subr.bf16.mxu0 0
    %180 = vmatpush1.bf16.msra.mxu0 %v171
    %181 = vmatprep.subr.bf16.mxu0 0
    %182 = vmatpush1.bf16.msra.mxu0 %v172
    %183 = vmatprep.subr.bf16.mxu0 0
    %184 = vmatpush1.bf16.msra.mxu0 %v173
    %185 = vmatprep.subr.bf16.mxu0 0
    %186 = vmatpush1.bf16.msra.mxu0 %v174
    %187 = vmatprep.subr.bf16.mxu0 0
    %188 = vmatpush1.bf16.msra.mxu0 0
    %189 = vmatprep.subr.bf16.mxu0 0
    %190 = vmatpush1.bf16.msra.mxu0 0
    %191 = vmatprep.subr.bf16.mxu0 0
    %192 = vmatpush1.bf16.msra.mxu0 0
    %193 = vmatprep.subr.bf16.mxu0 0
    %194 = vmatpush1.bf16.msra.mxu0 0
    %195 = vmatprep.subr.bf16.mxu0 0
    %196 = vmatpush1.bf16.msra.mxu0 0
    %197 = vmatprep.subr.bf16.mxu0 0
    %198 = vmatpush1.bf16.msra.mxu0 0
    %199 = vmatprep.subr.bf16.mxu0 0
    %200 = vmatpush1.bf16.msra.mxu0 0
    %201 = vmatprep.subr.bf16.mxu0 0
    %202 = vmatpush1.bf16.msra.mxu0 0
    %203 = vmatprep.subr.bf16.mxu0 0
    %204 = vmatpush1.bf16.msra.mxu0 0
    %205 = vmatprep.subr.bf16.mxu0 0
    %206 = vmatpush1.bf16.msra.mxu0 0
    %207 = vmatprep.subr.bf16.mxu0 0
    %208 = vmatpush1.bf16.msra.mxu0 0
    %209 = vmatprep.subr.bf16.mxu0 0
    %210 = vmatpush1.bf16.msra.mxu0 0
    %211 = vmatprep.mubr.bf16.mxu0 0
    %212 = vmatmul.mubr.bf16.gmra.mrb[0].mxu0 %v92
    %v213 = vpop.f32.mrb[0].mxu0
    %v214 = vadd.f32 0.0, %v213
    %v215 = vpop.f32.mrb[0].mxu0
    %v216 = vpop.f32.mrb[0].mxu0
    %v217 = vadd.f32 0.0, %v216
    %v218 = vpop.f32.mrb[0].mxu0
    %219 = vmatprep.mubr.bf16.mxu0 0
    %220 = vmatmul.mubr.bf16.gmra.mrb[0].mxu0 %v95
    %v221 = vpop.f32.mrb[0].mxu0
    %v222 = vadd.f32 0.0, %v221
    %v223 = vpop.f32.mrb[0].mxu0
    %v224 = vpop.f32.mrb[0].mxu0
    %v225 = vadd.f32 0.0, %v224
    %v226 = vpop.f32.mrb[0].mxu0
    %227 = vdwg.mxu0
    %s228 = scalar_lea.vmem [#allocation5], 64
    %v229 = vld [vmem:[%s228] sm:$0xf]
    %v230 = vld [vmem:[%s228 + $0x4] sm:$0xf]
    %v231 = vld [vmem:[%s228 + $0x8] sm:$0xf]
    %v232 = vld [vmem:[%s228 + $0xc] sm:$0xf]
    %v233 = vld [vmem:[%s228 + $0x10] sm:$0xf]
    %v234 = vld [vmem:[%s228 + $0x14] sm:$0xf]
    %v235 = vld [vmem:[%s228 + $0x18] sm:$0xf]
    %v236 = vld [vmem:[%s228 + $0x1c] sm:$0xf]
    %v245 = vunpack.c.l.b16 %v229
    %v246 = vunpack.c.l.b16 %v230
    %v247 = vunpack.c.l.b16 %v231
    %v248 = vunpack.c.l.b16 %v232
    %v249 = vunpack.c.l.b16 %v233
    %v250 = vunpack.c.l.b16 %v234
    %v251 = vunpack.c.l.b16 %v235
    %v252 = vunpack.c.l.b16 %v236
    %v253 = vpack.c.b16 %v246, %v245
    %v254 = vpack.c.b16 %v248, %v247
    %v255 = vpack.c.b16 %v250, %v249
    %v256 = vpack.c.b16 %v252, %v251
    %261 = vmatprep.subr.bf16.mxu0 0
    %262 = vmatpush1.bf16.msra.mxu0 %v253
    %263 = vmatprep.subr.bf16.mxu0 0
    %264 = vmatpush1.bf16.msra.mxu0 %v254
    %265 = vmatprep.subr.bf16.mxu0 0
    %266 = vmatpush1.bf16.msra.mxu0 %v255
    %267 = vmatprep.subr.bf16.mxu0 0
    %268 = vmatpush1.bf16.msra.mxu0 %v256
    %269 = vmatprep.subr.bf16.mxu0 0
    %270 = vmatpush1.bf16.msra.mxu0 0
    %271 = vmatprep.subr.bf16.mxu0 0
    %272 = vmatpush1.bf16.msra.mxu0 0
    %273 = vmatprep.subr.bf16.mxu0 0
    %274 = vmatpush1.bf16.msra.mxu0 0
    %275 = vmatprep.subr.bf16.mxu0 0
    %276 = vmatpush1.bf16.msra.mxu0 0
    %277 = vmatprep.subr.bf16.mxu0 0
    %278 = vmatpush1.bf16.msra.mxu0 0
    %279 = vmatprep.subr.bf16.mxu0 0
    %280 = vmatpush1.bf16.msra.mxu0 0
    %281 = vmatprep.subr.bf16.mxu0 0
    %282 = vmatpush1.bf16.msra.mxu0 0
    %283 = vmatprep.subr.bf16.mxu0 0
    %284 = vmatpush1.bf16.msra.mxu0 0
    %285 = vmatprep.subr.bf16.mxu0 0
    %286 = vmatpush1.bf16.msra.mxu0 0
    %287 = vmatprep.subr.bf16.mxu0 0
    %288 = vmatpush1.bf16.msra.mxu0 0
    %289 = vmatprep.subr.bf16.mxu0 0
    %290 = vmatpush1.bf16.msra.mxu0 0
    %291 = vmatprep.subr.bf16.mxu0 0
    %292 = vmatpush1.bf16.msra.mxu0 0
    %293 = vmatprep.mubr.bf16.mxu0 0
    %294 = vmatmul.mubr.bf16.gmra.mrb[0].mxu0 %v92
    %v295 = vpop.f32.mrb[0].mxu0
    %v296 = vadd.f32 0.0, %v295
    %v297 = vpop.f32.mrb[0].mxu0
    %v298 = vpop.f32.mrb[0].mxu0
    %v299 = vadd.f32 0.0, %v298
    %v300 = vpop.f32.mrb[0].mxu0
    %301 = vmatprep.mubr.bf16.mxu0 0
    %302 = vmatmul.mubr.bf16.gmra.mrb[0].mxu0 %v95
    %v303 = vpop.f32.mrb[0].mxu0
    %v304 = vadd.f32 0.0, %v303
    %v305 = vpop.f32.mrb[0].mxu0
    %v306 = vpop.f32.mrb[0].mxu0
    %v307 = vadd.f32 0.0, %v306
    %v308 = vpop.f32.mrb[0].mxu0
    %309 = vdwg.mxu0
    %v310 = vlaneseq
    %v311 = vshrl.u32 %v310, 7
    %v312 = vadd.s32 %v311, 8
    %v313 = vadd.s32 %v311, 16
    %v314 = vadd.s32 %v311, 24
    %vm315 = vcmp.lt.s32.totalorder %v311, 0
    %v316 = vsub.s32 0, %v311
    %v317 = vsel %vm315, %v316, %v311
    %v318 = vshrl.u32 %v317, 4
    %v319 = vand.u32 %v317, 15
    %v320 = vsub.s32 0, %v319
    %v321 = vsel %vm315, %v320, %v319
    %vm322 = vcmp.lt.s32.totalorder %v312, 0
    %v323 = vsub.s32 0, %v312
    %v324 = vsel %vm322, %v323, %v312
    %v325 = vshrl.u32 %v324, 4
    %v326 = vand.u32 %v324, 15
    %v327 = vsub.s32 0, %v326
    %v328 = vsel %vm322, %v327, %v326
    %vm329 = vcmp.lt.s32.totalorder %v313, 0
    %v330 = vsub.s32 0, %v313
    %v331 = vsel %vm329, %v330, %v313
    %v332 = vshrl.u32 %v331, 4
    %v333 = vand.u32 %v331, 15
    %v334 = vsub.s32 0, %v333
    %v335 = vsel %vm329, %v334, %v333
    %vm336 = vcmp.lt.s32.totalorder %v314, 0
    %v337 = vsub.s32 0, %v314
    %v338 = vsel %vm336, %v337, %v314
    %v339 = vshrl.u32 %v338, 4
    %v340 = vand.u32 %v338, 15
    %v341 = vsub.s32 0, %v340
    %v342 = vsel %vm336, %v341, %v340
    %vm343 = vcmp.ne.s32.totalorder %v321, 0
    %vm344 = vcmp.ne.s32.totalorder %v328, 0
    %vm345 = vcmp.ne.s32.totalorder %v335, 0
    %vm346 = vcmp.ne.s32.totalorder %v342, 0
    %vm347 = vcmp.lt.s32.totalorder %v321, 0
    %vm348 = vcmp.lt.s32.totalorder %v328, 0
    %vm349 = vcmp.lt.s32.totalorder %v335, 0
    %vm350 = vcmp.lt.s32.totalorder %v342, 0
    %vm351 = vmand %vm347, %vm343
    %vm352 = vmand %vm348, %vm344
    %vm353 = vmand %vm349, %vm345
    %vm354 = vmand %vm350, %vm346
    %v355 = vadd.s32 %v321, 16
    %v356 = vadd.s32 %v328, 16
    %v357 = vadd.s32 %v335, 16
    %v358 = vadd.s32 %v342, 16
    %v359 = vsel %vm351, %v355, %v321
    %v360 = vsel %vm352, %v356, %v328
    %v361 = vsel %vm353, %v357, %v335
    %v362 = vsel %vm354, %v358, %v342
    %vm363 = vcmp.eq.s32.totalorder %v359, 0
    %vm364 = vcmp.eq.s32.totalorder %v360, 0
    %vm365 = vcmp.eq.s32.totalorder %v361, 0
    %vm366 = vcmp.eq.s32.totalorder %v362, 0
    %v367 = vrot.slane %v132, 7
    %v368 = vrot.slane %v135, 7
    %v369 = vrot.slane %v140, 7
    %v370 = vrot.slane %v143, 7
    %vm371 = vcmp.lt.s32.totalorder %v311, 1
    %v372 = vsel %vm371, %v369, %v370
    %v373 = vsel %vm371, %v368, %v369
    %v374 = vsel %vm371, %v367, %v368
    %v375 = vsel %vm371, %v370, %v367
    %v376 = vsel %vm363, 0.0, %v375
    %v377 = vsel %vm364, 0.0, %v374
    %v378 = vsel %vm365, 0.0, %v373
    %v379 = vsel %vm366, 0.0, %v372
    %vm380 = vcmp.eq.s32.totalorder %v359, 15
    %vm381 = vcmp.eq.s32.totalorder %v360, 15
    %vm382 = vcmp.eq.s32.totalorder %v361, 15
    %vm383 = vcmp.eq.s32.totalorder %v362, 15
    %v384 = vrot.slane %v296, 1
    %v385 = vrot.slane %v299, 1
    %v386 = vrot.slane %v304, 1
    %v387 = vrot.slane %v307, 1
    %vm388 = vcmp.lt.s32.totalorder %v311, 7
    %v389 = vsel %vm388, %v386, %v387
    %v390 = vsel %vm388, %v385, %v386
    %v391 = vsel %vm388, %v384, %v385
    %v392 = vsel %vm388, %v387, %v384
    %v393 = vsel %vm380, 0.0, %v391
    %v394 = vsel %vm381, 0.0, %v390
    %v395 = vsel %vm382, 0.0, %v389
    %v396 = vsel %vm383, 0.0, %v392
    %v397 = vadd.f32 %v376, %v214
    %v398 = vadd.f32 %v377, %v217
    %v399 = vadd.f32 %v378, %v222
    %v400 = vadd.f32 %v379, %v225
    %v401 = vadd.f32 %v397, %v393
    %v402 = vadd.f32 %v398, %v394
    %v403 = vadd.f32 %v399, %v395
    %v404 = vadd.f32 %v400, %v396
    %v405 = vld [vmem:[%s2] sm:$0x1]
    %v407 = vlaneseq
    %v408 = vshrl.u32 %v407, 7
    %v409 = vsub.s32 0, %v408
    %v410 = vrot.slane %v405, %v409
    %v412 = vadd.f32 %v401, %v410
    %v413 = vadd.f32 %v402, %v410
    %v414 = vadd.f32 %v403, %v410
    %v415 = vadd.f32 %v404, %v410
    %v416 = vmax.f32 %v412, -1.0
    %v417 = vmax.f32 %v413, -1.0
    %v418 = vmax.f32 %v414, -1.0
    %v419 = vmax.f32 %v415, -1.0
    %v420 = vmin.f32 %v416, 1.0
    %v421 = vmin.f32 %v417, 1.0
    %v422 = vmin.f32 %v418, 1.0
    %v423 = vmin.f32 %v419, 1.0
    %424 = vst [vmem:[#allocation7] sm:$0xff] %v420
    %425 = vst [vmem:[#allocation7 + $0x8] sm:$0xff] %v421
    %426 = vst [vmem:[#allocation7 + $0x10] sm:$0xff] %v422
    %427 = vst [vmem:[#allocation7 + $0x18] sm:$0xff] %v423
    // Predicated region
    $region22: #{tpu_custom_call.1} parent=1 // pred_check
      _
    $region23: #{tpu_custom_call.1} parent=1 // pred_check_branch
      %429 = sbr.rel (0) target = $region25
    $region24: #{tpu_custom_call.1} parent=1 // pred_region
      %s431 = ssub.s32 512, 512
      %432 = vsyncadd [#allocation4], %s431
      %s433 = sshll.u32 [#allocation7], 4
      %s434 = int_to_ptr.vmem [resolvable:$true] %s433
      %439 = dma.vmem_to_hbm [thread:$0]  %s434, 512, %s3, [#allocation4], 128, 128, 8
    $region25: #{tpu_custom_call.1} parent=1 // pred_fallthru
      _
    // Predicated region
    $region26: #{tpu_custom_call.1} parent=1 // pred_check
      _
    $region27: #{tpu_custom_call.1} parent=1 // pred_check_branch
      %441 = sbr.rel (0) target = $region29
    $region28: #{tpu_custom_call.1} parent=1 // pred_region
      %442 = dma.done [#allocation4], 512
    $region29: #{tpu_custom_call.1} parent=1 // pred_fallthru
      _
    %443 = vsyncpa [#allocation3], 1
    %444 = vsyncpa [#allocation6], 1
    %445 = vsyncpa [#allocation4], 1

</llo_original>
